<compile_context>
chip_gen: v6e
topology: v6e:2x2x1
jax: 0.10.0
libtpu: 0.0.40
codegen_flags: <defaults>
</compile_context>

<pallas_src>
import functools

import jax
import jax.numpy as jnp
from jax.experimental import pallas as pl
from jax.experimental.pallas import tpu as pltpu

_EPS = 1e-8           # torch.nn.CosineSimilarity default eps
_EPS_SQ = _EPS * _EPS


# ---------------------------------------------------------------------------
# Kernel bodies
# ---------------------------------------------------------------------------

def _load_labels(lab_ref, *, block_b, labels_resident):
    """Return the (block_b, 1) f32 label column for the current batch tile."""
    if labels_resident:
        off = pl.program_id(0) * block_b
        if block_b % 8 == 0:
            off = pl.multiple_of(off, 8)     # sublane-aligned dynamic slice
        return lab_ref[pl.ds(off, block_b), :]
    return lab_ref[...]


def _partial_mse(e1, e2, lab, out_ref, *, total_b, block_b):
    """Write this tile's partial sum of (cos(e1,e2) - label)^2 into out_ref.

    e1, e2: (TB, D) f32     lab: (TB, 1) f32     out_ref: (1, 8, 128) f32
    out_ref holds the partial sum broadcast to one full vreg (lane-dense,
    unmasked store); the wrapper sums partials and divides by the true B.
    """
    dot = jnp.sum(e1 * e2, axis=1, keepdims=True)        # (TB, 1)
    n1sq = jnp.sum(e1 * e1, axis=1, keepdims=True)       # (TB, 1)
    n2sq = jnp.sum(e2 * e2, axis=1, keepdims=True)       # (TB, 1)

    # torch: denom = max(||x1||, eps) * max(||x2||, eps).  Two EUP rsqrts
    # (free slot) instead of two sqrt + divide; per-norm clamp also avoids
    # overflow of n1sq * n2sq for large embeddings.
    cos = (dot
           * jax.lax.rsqrt(jnp.maximum(n1sq, _EPS_SQ))
           * jax.lax.rsqrt(jnp.maximum(n2sq, _EPS_SQ)))

    diff = cos - lab
    sq = diff * diff                                      # (TB, 1)

    out_ref[...] = jnp.broadcast_to(jnp.sum(sq), out_ref.shape).astype(jnp.float32)

    if total_b % block_b != 0:
        # Only the last tile has padded rows (stale/garbage data past B); mask
        # them out there.  jnp.where on sq zeroes any NaN/Inf they produced.
        last = pl.num_programs(0) - 1

        @pl.when(pl.program_id(0) == last)
        def _():
            rem = total_b - last * block_b
            row = jax.lax.broadcasted_iota(jnp.int32, sq.shape, 0)
            masked = jnp.where(row < rem, sq, 0.0)
            out_ref[...] = jnp.broadcast_to(jnp.sum(masked),
                                            out_ref.shape).astype(jnp.float32)


def _cos_mse_kernel_2d(x_ref, lab_ref, out_ref, *, d, total_b, block_b,
                       labels_resident):
    """Fast path: x_ref is a (TB, 2*D) lane-dense view; D % 128 == 0."""
    e1 = x_ref[:, :d].astype(jnp.float32)          # lane-aligned ref slice
    e2 = x_ref[:, d:2 * d].astype(jnp.float32)
    lab = _load_labels(lab_ref, block_b=block_b, labels_resident=labels_resident)
    _partial_mse(e1, e2, lab, out_ref, total_b=total_b, block_b=block_b)


def _cos_mse_kernel_3d(x_ref, lab_ref, out_ref, *, total_b, block_b,
                       labels_resident):
    """Fallback path for D % 128 != 0: x_ref is (TB, 2, D)."""
    e1 = x_ref[:, 0, :].astype(jnp.float32)
    e2 = x_ref[:, 1, :].astype(jnp.float32)
    lab = _load_labels(lab_ref, block_b=block_b, labels_resident=labels_resident)
    _partial_mse(e1, e2, lab, out_ref, total_b=total_b, block_b=block_b)


# ---------------------------------------------------------------------------
# Wrapper
# ---------------------------------------------------------------------------

def _vmem_capacity_bytes():
    try:
        return int(pltpu.get_tpu_info().vmem_capacity_bytes)
    except Exception:
        return 64 * 1024 * 1024          # v7x-safe default


def _choose_block_b(d, itemsize, pad_factor):
    """Rows per batch tile, targeting ~8-12 MiB of *real* input bytes per block.

    Big enough to amortize the ~0.35 us per-grid-step pipeline cost on every
    generation, small enough that two pipeline buffers plus the in-kernel f32
    temporaries fit v7x's 64 MiB VMEM (v5e/v6e have 128 MiB).  `pad_factor`
    accounts for the 4x/8x sublane padding of the (TB, 2, D) fallback layout.
    """
    vmem = _vmem_capacity_bytes()
    budget = min(12 * 1024 * 1024, vmem // 8) // pad_factor
    row_bytes = 2 * d * itemsize
    tb = budget // max(row_bytes, 1)
    align = 16 if itemsize < 4 else 8      # bf16 packs 16 rows per sublane tile
    tb = max((tb // align) * align, align)
    # Cap so the (TB, 1) per-row f32 intermediates stay a few MiB for small D.
    return min(tb, 4096)


def cosine_similarity_loss(inputs, labels, block_b=None):
    """inputs: (B, 2, D) float array of embedding pairs; labels: (B,) or (B, 1)."""
    B, npair, D = inputs.shape
    assert npair == 2
    itemsize = jnp.dtype(inputs.dtype).itemsize
    align = 16 if itemsize < 4 else 8

    lanes_aligned = (D % 128 == 0)
    pad_factor = 1 if lanes_aligned else (8 if itemsize < 4 else 4)

    if block_b is None:
        block_b = _choose_block_b(D, itemsize, pad_factor)
        if block_b >= B and B >= 2 * align:
            # Keep the "parallel" batch axis >= 2 grid steps so both v7x
            # TensorCores get work (negligible extra step cost on 1-TC chips).
            block_b = align * pl.cdiv(pl.cdiv(B, 2), align)
    block_b = max(1, min(block_b, B))
    grid_b = pl.cdiv(B, block_b)
    if grid_b > 1:
        assert block_b % 8 == 0, "block_b must be a multiple of 8 when tiling the batch"
    b_padded = grid_b * block_b

    # Labels: tiny -> pad so they tile evenly; keep whole array VMEM-resident
    # (single DMA, constant index_map) unless the batch is huge.
    lab = jnp.reshape(labels, (-1,)).astype(jnp.float32)      # labels.squeeze()
    if b_padded != B:
        lab = jnp.pad(lab, (0, b_padded - B))
    lab = lab.reshape(b_padded, 1)

    labels_resident = (b_padded * 512) <= (2 * 1024 * 1024)   # lane-padded VMEM cost
    if labels_resident:
        lab_spec = pl.BlockSpec((b_padded, 1), lambda i: (0, 0))
    else:
        lab_spec = pl.BlockSpec((block_b, 1), lambda i: (i, 0))

    if lanes_aligned:
        # Free view of the contiguous (B, 2, D) array -> lane-dense blocks.
        x = inputs.reshape(B, 2 * D)
        x_spec = pl.BlockSpec((block_b, 2 * D), lambda i: (i, 0))
        kernel = functools.partial(_cos_mse_kernel_2d, d=D, total_b=B,
                                   block_b=block_b,
                                   labels_resident=labels_resident)
    else:
        x = inputs
        x_spec = pl.BlockSpec((block_b, 2, D), lambda i: (i, 0, 0))
        kernel = functools.partial(_cos_mse_kernel_3d, total_b=B,
                                   block_b=block_b,
                                   labels_resident=labels_resident)

    vmem_cap = _vmem_capacity_bytes()
    vmem_limit = max(48 * 1024 * 1024,
                     min(vmem_cap - 16 * 1024 * 1024, 100 * 1024 * 1024))

    partials = pl.pallas_call(
        kernel,
        out_shape=jax.ShapeDtypeStruct((grid_b, 8, 128), jnp.float32),
        grid=(grid_b,),
        in_specs=[x_spec, lab_spec],
        out_specs=pl.BlockSpec((1, 8, 128), lambda i: (i, 0, 0)),
        compiler_params=pltpu.CompilerParams(
            dimension_semantics=("parallel",),
            vmem_limit_bytes=vmem_limit,
        ),
    )(x, lab)

    # Final mean over the true batch size (partials already exclude padded rows).
    return jnp.sum(partials[:, 0, 0]) / B


# ---------------------------------------------------------------------------
# Reference + demo
# ---------------------------------------------------------------------------

def _reference_loss(inputs, labels):
    x = inputs.astype(jnp.float32)
    e1, e2 = x[:, 0, :], x[:, 1, :]
    n1 = jnp.maximum(jnp.linalg.norm(e1, axis=1), _EPS)
    n2 = jnp.maximum(jnp.linalg.norm(e2, axis=1), _EPS)
    cos = jnp.sum(e1 * e2, axis=1) / (n1 * n2)
    lab = jnp.reshape(labels, (-1,)).astype(jnp.float32)
    return jnp.mean((cos - lab) ** 2)


if __name__ == "__main__":
    key = jax.random.PRNGKey(0)
    keys = jax.random.split(key, 8)

    # Case 1: fast (lane-aligned) path, single tile.
    B1, D1 = 8, 128
    x1 = jax.random.normal(keys[0], (B1, 2, D1), dtype=jnp.float32)
    y1 = jax.random.uniform(keys[1], (B1, 1), dtype=jnp.float32) * 2.0 - 1.0
    l1 = jax.block_until_ready(cosine_similarity_loss(x1, y1))
    r1 = _reference_loss(x1, y1)
    assert jnp.allclose(l1, r1, atol=1e-5, rtol=1e-5), (l1, r1)

    # Case 2: fast path, multi-tile "parallel" grid with a ragged last tile
    # (masked rows) and VMEM-resident labels.
    B2, D2, TB2 = 20, 128, 8
    x2 = jax.random.normal(keys[2], (B2, 2, D2), dtype=jnp.float32)
    y2 = jax.random.uniform(keys[3], (B2, 1), dtype=jnp.float32) * 2.0 - 1.0
    l2 = jax.block_until_ready(cosine_similarity_loss(x2, y2, block_b=TB2))
    r2 = _reference_loss(x2, y2)
    assert jnp.allclose(l2, r2, atol=1e-5, rtol=1e-5), (l2, r2)

    # Case 3: fallback path (D not a multiple of 128), single tile.
    B3, D3 = 12, 32
    x3 = jax.random.normal(keys[4], (B3, 2, D3), dtype=jnp.float32)
    y3 = jax.random.uniform(keys[5], (B3, 1), dtype=jnp.float32) * 2.0 - 1.0
    l3 = jax.block_until_ready(cosine_similarity_loss(x3, y3))
    r3 = _reference_loss(x3, y3)
    assert jnp.allclose(l3, r3, atol=1e-5, rtol=1e-5), (l3, r3)

    # Case 4: bf16 embeddings on the fast path, even multi-tile grid.
    B4, D4, TB4 = 48, 128, 16
    x4 = jax.random.normal(keys[6], (B4, 2, D4), dtype=jnp.float32).astype(jnp.bfloat16)
    y4 = jax.random.uniform(keys[7], (B4, 1), dtype=jnp.float32) * 2.0 - 1.0
    l4 = jax.block_until_ready(cosine_similarity_loss(x4, y4, block_b=TB4))
    r4 = _reference_loss(x4, y4)
    assert jnp.allclose(l4, r4, atol=1e-5, rtol=1e-5), (l4, r4)

    print("KERNEL_OK")
</pallas_src>

<mosaic_0001>
module attributes {stable_mosaic.version = 11 : i64} {
  func.func @_cos_mse_kernel_2d(%arg0: i32, %arg1: memref<8x256xf32, #tpu.memory_space<vmem>>, %arg2: memref<8x1xf32, #tpu.memory_space<vmem>>, %arg3: memref<1x8x128xf32, #tpu.memory_space<vmem>>) attributes {dimension_semantics = [#tpu.dimension_semantics<parallel>], iteration_bounds = array<i64: 1>, scalar_prefetch = 0 : i64, scratch_operands = 0 : i64, tpu.core_type = #tpu.core_type<tc>, window_params = [{transform_indices = @transform_0, window_bounds = array<i64: 8, 256>}, {pipeline_mode = #tpu.pipeline_mode<synchronous>, transform_indices = @transform_1, window_bounds = array<i64: 8, 1>}, {transform_indices = @transform_2, window_bounds = array<i64: 1, 8, 128>}]} {
    %c0 = arith.constant 0 : index
    %c0_0 = arith.constant 0 : index
    %0 = vector.load %arg1[%c0, %c0_0] : memref<8x256xf32, #tpu.memory_space<vmem>>, vector<8x128xf32>
    %c0_1 = arith.constant 0 : index
    %c128 = arith.constant 128 : index
    %1 = vector.load %arg1[%c0_1, %c128] : memref<8x256xf32, #tpu.memory_space<vmem>>, vector<8x128xf32>
    %c8_i32 = arith.constant 8 : i32
    %2 = arith.muli %arg0, %c8_i32 : i32
    %3 = tpu.assume_multiple %2, 8 : i32
    %4 = arith.index_cast %3 : i32 to index
    %c0_2 = arith.constant 0 : index
    %5 = vector.load %arg2[%4, %c0_2] : memref<8x1xf32, #tpu.memory_space<vmem>>, vector<8x1xf32>
    %6 = arith.mulf %0, %1 : vector<8x128xf32>
    %cst = arith.constant dense<0.000000e+00> : vector<8xf32>
    %7 = vector.multi_reduction <add>, %6, %cst [1] : vector<8x128xf32> to vector<8xf32>
    %8 = vector.shape_cast %7 : vector<8xf32> to vector<8x1xf32>
    %9 = arith.mulf %0, %0 : vector<8x128xf32>
    %cst_3 = arith.constant dense<0.000000e+00> : vector<8xf32>
    %10 = vector.multi_reduction <add>, %9, %cst_3 [1] : vector<8x128xf32> to vector<8xf32>
    %11 = vector.shape_cast %10 : vector<8xf32> to vector<8x1xf32>
    %12 = arith.mulf %1, %1 : vector<8x128xf32>
    %cst_4 = arith.constant dense<0.000000e+00> : vector<8xf32>
    %13 = vector.multi_reduction <add>, %12, %cst_4 [1] : vector<8x128xf32> to vector<8xf32>
    %14 = vector.shape_cast %13 : vector<8xf32> to vector<8x1xf32>
    %cst_5 = arith.constant 1.000000e-16 : f32
    %15 = vector.broadcast %cst_5 : f32 to vector<8x1xf32>
    %16 = arith.maximumf %11, %15 : vector<8x1xf32>
    %17 = math.rsqrt %16 : vector<8x1xf32>
    %18 = arith.mulf %8, %17 : vector<8x1xf32>
    %cst_6 = arith.constant 1.000000e-16 : f32
    %19 = vector.broadcast %cst_6 : f32 to vector<8x1xf32>
    %20 = arith.maximumf %14, %19 : vector<8x1xf32>
    %21 = math.rsqrt %20 : vector<8x1xf32>
    %22 = arith.mulf %18, %21 : vector<8x1xf32>
    %23 = arith.subf %22, %5 : vector<8x1xf32>
    %24 = arith.mulf %23, %23 : vector<8x1xf32>
    %25 = vector.shape_cast %24 : vector<8x1xf32> to vector<1x8x1xf32>
    %cst_7 = arith.constant dense<0.000000e+00> : vector<1xf32>
    %26 = vector.multi_reduction <add>, %25, %cst_7 [1, 2] : vector<1x8x1xf32> to vector<1xf32>
    %27 = vector.shape_cast %26 : vector<1xf32> to vector<1x1x1xf32>
    %28 = vector.extract %27[0, 0, 0] : f32 from vector<1x1x1xf32>
    %29 = vector.broadcast %28 : f32 to vector<1x8x128xf32>
    %c0_8 = arith.constant 0 : index
    %c0_9 = arith.constant 0 : index
    %c0_10 = arith.constant 0 : index
    %30 = vector.load %arg3[%c0_8, %c0_9, %c0_10] : memref<1x8x128xf32, #tpu.memory_space<vmem>>, vector<1x8x128xf32>
    tpu.vector_store %arg3[%c0_8, %c0_9, %c0_10], %29 {strides = array<i32>} : memref<1x8x128xf32, #tpu.memory_space<vmem>>, vector<1x8x128xf32>,
    return
  }
  func.func @transform_0(%arg0: i32) -> (i32, i32) {
    %c0_i32 = arith.constant 0 : i32
    %c0_i32_0 = arith.constant 0 : i32
    return %arg0, %c0_i32 : i32, i32
  }
  func.func @transform_1(%arg0: i32) -> (i32, i32) {
    %c0_i32 = arith.constant 0 : i32
    %c0_i32_0 = arith.constant 0 : i32
    %c0_i32_1 = arith.constant 0 : i32
    return %c0_i32, %c0_i32_0 : i32, i32
  }
  func.func @transform_2(%arg0: i32) -> (i32, i32, i32) {
    %c0_i32 = arith.constant 0 : i32
    %c0_i32_0 = arith.constant 0 : i32
    %c0_i32_1 = arith.constant 0 : i32
    return %arg0, %c0_i32, %c0_i32_0 : i32, i32, i32
  }
}

</mosaic_0001>

<llo_original>
// kernel: tpu_custom_call.1
$region0: #{tpu_custom_call.1}
  #allocation0 [shape = 'u32[]', space=smem, size = 0x4, offset = 0x4, fixed_abs, tag = 'smem constant byte address 0x4 - core index']
  #allocation1 [shape = 'u32[144,128]{1,0:T(1,128)}', space=vmem, size = 0x12000, scoped, tag = 'internal scratch']
  %s0 = inlined_call_operand.hbm [shape: f32[8,256], index: 0, kind: input, shape index: {}]
  %s1 = inlined_call_operand.vmem [shape: f32[8,1], index: 1, kind: input, shape index: {}]
  %s2 = inlined_call_operand.hbm [shape: f32[1,8,128], index: 2, kind: output, shape index: {}]
  %s3 = sld [smem:[#allocation0]]
  $region22: #{tpu_custom_call.1} parent=0
    _
  %s5 = ssub.s32 1, %s3
  %s6 = scalar_select 0, %s5, %s3
  $region1: #{tpu_custom_call.1} parent=0
    #allocation2 [shape = 'u8[8192]{0}', space=vmem, size = 0x2000, scoped, tag = 'input window, operand 0, single buffered']
    #allocation3 [shape = 's32[1]{0}', space=sflag, size = 0x4, scoped, tag = 'scoped memory for tpu_custom_call.1']
    #allocation4 [shape = 's32[1]{0}', space=sflag, size = 0x4, scoped, tag = 'scoped memory for tpu_custom_call.1']
    #allocation5 [shape = 'u8[4096]{0}', space=vmem, size = 0x1000, scoped, tag = 'output window, operand 0, single buffered']
    %7 = vsyncpa [#allocation3], 0
    %8 = vsyncpa [#allocation4], 0
    // Predicated region
    $region2: #{tpu_custom_call.1} parent=1 // pred_check
      _
    $region3: #{tpu_custom_call.1} parent=1 // pred_check_branch
      %10 = sbr.rel (0) target = $region5
    $region4: #{tpu_custom_call.1} parent=1 // pred_region
      %s12 = ssub.s32 256, 256
      %13 = vsyncadd [#allocation3], %s12
      %s15 = sshll.u32 [#allocation2], 4
      %s16 = int_to_ptr.vmem [resolvable:$true] %s15
      %18 = dma.hbm_to_vmem [thread:$0]  %s0, 256, %s16, [#allocation3]
    $region5: #{tpu_custom_call.1} parent=1 // pred_fallthru
      _
    // Predicated region
    $region6: #{tpu_custom_call.1} parent=1 // pred_check
      _
    $region7: #{tpu_custom_call.1} parent=1 // pred_check_branch
      %20 = sbr.rel (0) target = $region9
    $region8: #{tpu_custom_call.1} parent=1 // pred_region
      _
    $region9: #{tpu_custom_call.1} parent=1 // pred_fallthru
      _
    // Predicated region
    $region10: #{tpu_custom_call.1} parent=1 // pred_check
      _
    $region11: #{tpu_custom_call.1} parent=1 // pred_check_branch
      %22 = sbr.rel (0) target = $region13
    $region12: #{tpu_custom_call.1} parent=1 // pred_region
      %23 = dma.done [#allocation3], 256
    $region13: #{tpu_custom_call.1} parent=1 // pred_fallthru
      _
    %v24 = vld [vmem:[#allocation2] sm:$0xff]
    %v25 = vld [vmem:[#allocation2 + $0x8] sm:$0xff]
    %s26 = smul.u32 0, 8
    %s27 = scalar_lea.vmem %s1, %s26
    %v28 = vld [vmem:[%s27] sm:$0xff]
    %v29 = vmul.f32 %v24, %v25
    %30 = vadd.xlane.f32.xlu0 %v29
    %v31 = vpop.xlane.xlu0 %30
    %v32 = vmul.f32 %v24, %v24
    %33 = vadd.xlane.f32.xlu0 %v32
    %v34 = vpop.xlane.xlu0 %33
    %v35 = vmul.f32 %v25, %v25
    %36 = vadd.xlane.f32.xlu0 %v35
    %v37 = vpop.xlane.xlu0 %36
    %v38 = vmax.f32 %v34, 1e-16
    %v39 = vrsqrt.pop %v38
    %v40 = vmul.f32 %v31, %v39
    %v41 = vmax.f32 %v37, 1e-16
    %v42 = vrsqrt.pop %v41
    %v43 = vmul.f32 %v40, %v42
    %v44 = vsub.f32 %v43, %v28
    %v45 = vmul.f32 %v44, %v44
    %vm46 = vcmask 7168
    %v47 = vsel %vm46, %v45, 0.0
    %48 = vadd.xlane.f32.xlu0 %v47
    %v49 = vpop.xlane.xlu0 %48
    %v50 = vrot.slane %v49, 4
    %v51 = vadd.f32 %v49, %v50
    %v52 = vrot.slane %v51, 2
    %v53 = vadd.f32 %v51, %v52
    %v54 = vrot.slane %v53, 1
    %v55 = vadd.f32 %v53, %v54
    %s56 = vtos %v55
    %v57 = vstv %s56
    %58 = vst [vmem:[#allocation5] sm:$0xff] %v57
    // Predicated region
    $region14: #{tpu_custom_call.1} parent=1 // pred_check
      _
    $region15: #{tpu_custom_call.1} parent=1 // pred_check_branch
      %60 = sbr.rel (0) target = $region17
    $region16: #{tpu_custom_call.1} parent=1 // pred_region
      %s62 = ssub.s32 128, 128
      %63 = vsyncadd [#allocation4], %s62
      %s65 = sshll.u32 [#allocation5], 4
      %s66 = int_to_ptr.vmem [resolvable:$true] %s65
      %68 = dma.vmem_to_hbm [thread:$0]  %s66, 128, %s2, [#allocation4]
    $region17: #{tpu_custom_call.1} parent=1 // pred_fallthru
      _
    // Predicated region
    $region18: #{tpu_custom_call.1} parent=1 // pred_check
      _
    $region19: #{tpu_custom_call.1} parent=1 // pred_check_branch
      %70 = sbr.rel (0) target = $region21
    $region20: #{tpu_custom_call.1} parent=1 // pred_region
      %71 = dma.done [#allocation4], 128
    $region21: #{tpu_custom_call.1} parent=1 // pred_fallthru
      _
    %72 = vsyncpa [#allocation3], 1
    %73 = vsyncpa [#allocation4], 1

</llo_original>
